<compile_context>
chip_gen: v5e
topology: v5e:2x2
jax: 0.10.0
libtpu: 0.0.40
codegen_flags: <defaults>
</compile_context>

<pallas_src>
import functools

import jax
import jax.numpy as jnp
from jax.experimental import pallas as pl
from jax.experimental.pallas import tpu as pltpu


def _ohem_stats_kernel(ignore_index, num_heads, *refs):
    """Per-pixel CE / target-class prob for `num_heads` prediction heads.

    refs = (logits_0, ..., logits_{H-1}, target,
            ce_0, prob_0, ..., ce_{H-1}, prob_{H-1})
      logits_h    : (1, C, rows, 128) native dtype
      target      : (1, rows, 128)    int32
      ce_h/prob_h : (1, rows, 128)    f32
    """
    target_ref = refs[num_heads]
    out_refs = refs[num_heads + 1:]

    t = target_ref[0]                                   # (rows, 128) int32
    valid = t != ignore_index
    t_safe = jnp.where(valid, t, 0)                     # torch: target * valid

    for hd in range(num_heads):
        logits = refs[hd][0].astype(jnp.float32)        # (C, rows, 128)
        ce_ref, prob_ref = out_refs[2 * hd], out_refs[2 * hd + 1]
        c = logits.shape[0]

        m = jnp.max(logits, axis=0)                     # (rows, 128) dense
        e = jnp.exp(logits - m[None])                   # (C, rows, 128)
        z = jnp.sum(e, axis=0)                          # (rows, 128)

        # Pick the target-class logit / exp with statically-unrolled selects
        # (cheap VPU ops; avoids materializing a (C, rows, 128) one-hot).
        logit_t = jnp.zeros_like(m)
        e_t = jnp.zeros_like(z)
        for ci in range(c):
            sel = t_safe == ci
            logit_t = jnp.where(sel, logits[ci], logit_t)
            e_t = jnp.where(sel, e[ci], e_t)

        ce = (jnp.log(z) + m) - logit_t                 # logsumexp - logit[target]
        prob_t = e_t * pl.reciprocal(z, approx=True)    # softmax prob of target (EUP)

        ce_ref[0] = jnp.where(valid, ce, 0.0)
        # torch: prob.masked_fill_(~valid_mask, 1)
        prob_ref[0] = jnp.where(valid, prob_t, 1.0)


def _pick_block_rows(rows_total, c, num_heads, itemsize):
    """Largest legal sublane-row count per block under a ~16 MiB VMEM budget
    for the double-buffered logits streams of all heads."""
    budget = 16 * 1024 * 1024
    max_rows = budget // max(1, num_heads * c * 128 * itemsize * 2)
    max_rows = int(min(max(max_rows, 8), 256, rows_total))
    if rows_total <= max_rows:
        return rows_total            # single full-extent block is always legal
    r = (max_rows // 8) * 8
    while r >= 8:
        if rows_total % r == 0:      # block second-minor dim must be 8-aligned
            return r
        r -= 8
    # TODO(synk): pad the pixel-row axis for awkward spatial sizes instead of
    # falling back to one full-extent block.
    return rows_total


def _ohem_losses(preds_list, target, *, ignore_index, thresh, min_kept):
    """OhemCrossEntropy2dTensor.forward (use_weight=False) for one or more heads."""
    num_heads = len(preds_list)
    b, c, h, w = preds_list[0].shape
    hw = h * w
    assert hw % 128 == 0, "H*W must be a multiple of 128 (lane width)"
    # TODO(synk): pad the pixel axis when H*W is not a multiple of 128.
    rows_total = hw // 128

    # Free, contiguous reshapes -- no HBM transpose, no wrapper-side upcast.
    logits4d = [p.reshape(b, c, rows_total, 128) for p in preds_list]
    tgt = target.reshape(b, rows_total, 128).astype(jnp.int32)

    itemsize = jnp.dtype(preds_list[0].dtype).itemsize
    block_rows = _pick_block_rows(rows_total, c, num_heads, itemsize)
    grid = (b, rows_total // block_rows)

    px_spec = pl.BlockSpec((1, block_rows, 128), lambda bi, ri: (bi, ri, 0))
    logits_spec = pl.BlockSpec((1, c, block_rows, 128), lambda bi, ri: (bi, 0, ri, 0))
    out_sd = jax.ShapeDtypeStruct((b, rows_total, 128), jnp.float32)

    n_pix = b * hw
    cost = pl.CostEstimate(
        flops=num_heads * c * n_pix * 6,
        transcendentals=num_heads * (c + 1) * n_pix,
        bytes_accessed=(num_heads * c * n_pix * itemsize
                        + n_pix * 4 + num_heads * 2 * n_pix * 4),
    )

    outs = pl.pallas_call(
        functools.partial(_ohem_stats_kernel, ignore_index, num_heads),
        out_shape=tuple(out_sd for _ in range(2 * num_heads)),
        grid=grid,
        in_specs=[logits_spec] * num_heads + [px_spec],
        out_specs=tuple(px_spec for _ in range(2 * num_heads)),
        compiler_params=pltpu.CompilerParams(
            dimension_semantics=("parallel", "parallel")),
        cost_estimate=cost,
    )(*logits4d, tgt)

    # OHEM thresholding + masked mean: cheap element-wise / reduction work that
    # XLA fuses; keeping it out of Pallas avoids thousands of tiny grid steps.
    valid = tgt != ignore_index
    valid_f = valid.astype(jnp.float32)
    num_valid = jnp.sum(valid.astype(jnp.int32))
    # torch: `if min_kept > num_valid: pass  elif num_valid > 0: <ohem>`
    do_ohem = jnp.logical_and(num_valid >= min_kept, num_valid > 0)
    k = min(n_pix, int(min_kept))     # torch: index[min(len, min_kept) - 1]

    losses = []
    for hd in range(num_heads):
        ce, prob = outs[2 * hd], outs[2 * hd + 1]
        if min_kept > 0:
            # Exact k-th smallest target-class prob via top_k of negated values
            # (avoids a full multi-pass sort of all pixels).
            kth = -jax.lax.top_k(-prob.reshape(-1), k)[0][k - 1]
            threshold = jnp.maximum(kth, jnp.float32(thresh))
        else:
            threshold = jnp.float32(thresh)
        kept = (prob <= threshold).astype(jnp.float32)
        mask = jnp.where(do_ohem, valid_f * kept, valid_f)
        # CrossEntropyLoss(ignore_index, 'mean') = sum over kept / count kept
        losses.append(jnp.sum(ce * mask) / jnp.sum(mask))
    return losses


def criterion_ohem(preds, target, aux, *, aux_weight, thresh=0.7,
                   min_kept=100000, ignore_index=255):
    """Equivalent of CriterionOhem.forward(preds, target, aux)."""
    h, w = target.shape[1], target.shape[2]
    if aux_weight > 0:
        # Both heads fused into one pallas_call (shared target DMA, one launch).
        # TODO(synk): use_weight=True class-weighted CE path not implemented
        # (CriterionOhem default is use_weight=False).
        l1, l2 = _ohem_losses([preds, aux], target, ignore_index=ignore_index,
                              thresh=thresh, min_kept=min_kept)
        return l1 + aux_weight * l2
    else:
        assert preds.shape[2] == h and preds.shape[3] == w
        return _ohem_losses([preds], target, ignore_index=ignore_index,
                            thresh=thresh, min_kept=min_kept)[0]


if __name__ == "__main__":
    key = jax.random.PRNGKey(0)
    B, C, H, W = 2, 4, 16, 16
    IGNORE = 255

    k1, k2, k3, k4 = jax.random.split(key, 4)
    preds = jax.random.normal(k1, (B, C, H, W), jnp.float32)   # main head logits
    aux = jax.random.normal(k2, (B, C, H, W), jnp.float32)     # aux head logits
    target = jax.random.randint(k3, (B, H, W), 0, C).astype(jnp.int32)
    # sprinkle some ignored pixels
    ignore_mask = jax.random.uniform(k4, (B, H, W)) < 0.1
    target = jnp.where(ignore_mask, IGNORE, target)

    # min_kept=200 < num_valid exercises the hard-example-mining branch at this size
    loss_fn = jax.jit(functools.partial(criterion_ohem, aux_weight=0.4,
                                        thresh=0.7, min_kept=200,
                                        ignore_index=IGNORE))
    loss = loss_fn(preds, target, aux)
    loss = jax.block_until_ready(loss)
    print("KERNEL_OK")
</pallas_src>

<mosaic_0001>
module attributes {stable_mosaic.version = 11 : i64} {
  func.func @_ohem_stats_kernel(%arg0: i32, %arg1: i32, %arg2: memref<1x4x2x128xf32, #tpu.memory_space<vmem>>, %arg3: memref<1x4x2x128xf32, #tpu.memory_space<vmem>>, %arg4: memref<1x2x128xi32, #tpu.memory_space<vmem>>, %arg5: memref<1x2x128xf32, #tpu.memory_space<vmem>>, %arg6: memref<1x2x128xf32, #tpu.memory_space<vmem>>, %arg7: memref<1x2x128xf32, #tpu.memory_space<vmem>>, %arg8: memref<1x2x128xf32, #tpu.memory_space<vmem>>) attributes {dimension_semantics = [#tpu.dimension_semantics<parallel>, #tpu.dimension_semantics<parallel>], iteration_bounds = array<i64: 2, 1>, scalar_prefetch = 0 : i64, scratch_operands = 0 : i64, tpu.core_type = #tpu.core_type<tc>, window_params = [{transform_indices = @transform_0, window_bounds = array<i64: 1, 4, 2, 128>}, {transform_indices = @transform_1, window_bounds = array<i64: 1, 4, 2, 128>}, {transform_indices = @transform_2, window_bounds = array<i64: 1, 2, 128>}, {transform_indices = @transform_3, window_bounds = array<i64: 1, 2, 128>}, {transform_indices = @transform_4, window_bounds = array<i64: 1, 2, 128>}, {transform_indices = @transform_5, window_bounds = array<i64: 1, 2, 128>}, {transform_indices = @transform_6, window_bounds = array<i64: 1, 2, 128>}]} {
    %c0 = arith.constant 0 : index
    %c0_0 = arith.constant 0 : index
    %c0_1 = arith.constant 0 : index
    %0 = vector.load %arg4[%c0, %c0_0, %c0_1] : memref<1x2x128xi32, #tpu.memory_space<vmem>>, vector<1x2x128xi32>
    %1 = vector.shape_cast %0 : vector<1x2x128xi32> to vector<2x128xi32>
    %c255_i32 = arith.constant 255 : i32
    %2 = vector.broadcast %c255_i32 : i32 to vector<2x128xi32>
    %3 = arith.cmpi ne, %1, %2 : vector<2x128xi32>
    %c0_i32 = arith.constant 0 : i32
    %4 = vector.broadcast %c0_i32 : i32 to vector<2x128xi32>
    %5 = arith.select %3, %1, %4 : vector<2x128xi1>, vector<2x128xi32>
    %c0_2 = arith.constant 0 : index
    %c0_3 = arith.constant 0 : index
    %c0_4 = arith.constant 0 : index
    %c0_5 = arith.constant 0 : index
    %6 = vector.load %arg2[%c0_2, %c0_3, %c0_4, %c0_5] : memref<1x4x2x128xf32, #tpu.memory_space<vmem>>, vector<1x4x2x128xf32>
    %7 = vector.shape_cast %6 : vector<1x4x2x128xf32> to vector<4x2x128xf32>
    %cst = arith.constant dense<0xFF800000> : vector<2x128xf32>
    %8 = vector.multi_reduction <maximumf>, %7, %cst [0] : vector<4x2x128xf32> to vector<2x128xf32>
    %9 = vector.shape_cast %8 : vector<2x128xf32> to vector<1x2x128xf32>
    %10 = vector.broadcast %9 : vector<1x2x128xf32> to vector<4x2x128xf32>
    %11 = arith.subf %7, %10 : vector<4x2x128xf32>
    %12 = math.exp %11 : vector<4x2x128xf32>
    %cst_6 = arith.constant dense<0.000000e+00> : vector<2x128xf32>
    %13 = vector.multi_reduction <add>, %12, %cst_6 [0] : vector<4x2x128xf32> to vector<2x128xf32>
    %cst_7 = arith.constant 0.000000e+00 : f32
    %14 = vector.broadcast %cst_7 : f32 to vector<2x128xf32>
    %cst_8 = arith.constant 0.000000e+00 : f32
    %15 = vector.broadcast %cst_8 : f32 to vector<2x128xf32>
    %c0_i32_9 = arith.constant 0 : i32
    %16 = vector.broadcast %c0_i32_9 : i32 to vector<2x128xi32>
    %17 = arith.cmpi eq, %5, %16 : vector<2x128xi32>
    %18 = vector.extract_strided_slice %7 {offsets = [0, 0, 0], sizes = [1, 2, 128], strides = [1, 1, 1]} : vector<4x2x128xf32> to vector<1x2x128xf32>
    %19 = vector.shape_cast %18 : vector<1x2x128xf32> to vector<2x128xf32>
    %20 = arith.select %17, %19, %14 : vector<2x128xi1>, vector<2x128xf32>
    %21 = vector.extract_strided_slice %12 {offsets = [0, 0, 0], sizes = [1, 2, 128], strides = [1, 1, 1]} : vector<4x2x128xf32> to vector<1x2x128xf32>
    %22 = vector.shape_cast %21 : vector<1x2x128xf32> to vector<2x128xf32>
    %23 = arith.select %17, %22, %15 : vector<2x128xi1>, vector<2x128xf32>
    %c1_i32 = arith.constant 1 : i32
    %24 = vector.broadcast %c1_i32 : i32 to vector<2x128xi32>
    %25 = arith.cmpi eq, %5, %24 : vector<2x128xi32>
    %26 = vector.extract_strided_slice %7 {offsets = [1, 0, 0], sizes = [1, 2, 128], strides = [1, 1, 1]} : vector<4x2x128xf32> to vector<1x2x128xf32>
    %27 = vector.shape_cast %26 : vector<1x2x128xf32> to vector<2x128xf32>
    %28 = arith.select %25, %27, %20 : vector<2x128xi1>, vector<2x128xf32>
    %29 = vector.extract_strided_slice %12 {offsets = [1, 0, 0], sizes = [1, 2, 128], strides = [1, 1, 1]} : vector<4x2x128xf32> to vector<1x2x128xf32>
    %30 = vector.shape_cast %29 : vector<1x2x128xf32> to vector<2x128xf32>
    %31 = arith.select %25, %30, %23 : vector<2x128xi1>, vector<2x128xf32>
    %c2_i32 = arith.constant 2 : i32
    %32 = vector.broadcast %c2_i32 : i32 to vector<2x128xi32>
    %33 = arith.cmpi eq, %5, %32 : vector<2x128xi32>
    %34 = vector.extract_strided_slice %7 {offsets = [2, 0, 0], sizes = [1, 2, 128], strides = [1, 1, 1]} : vector<4x2x128xf32> to vector<1x2x128xf32>
    %35 = vector.shape_cast %34 : vector<1x2x128xf32> to vector<2x128xf32>
    %36 = arith.select %33, %35, %28 : vector<2x128xi1>, vector<2x128xf32>
    %37 = vector.extract_strided_slice %12 {offsets = [2, 0, 0], sizes = [1, 2, 128], strides = [1, 1, 1]} : vector<4x2x128xf32> to vector<1x2x128xf32>
    %38 = vector.shape_cast %37 : vector<1x2x128xf32> to vector<2x128xf32>
    %39 = arith.select %33, %38, %31 : vector<2x128xi1>, vector<2x128xf32>
    %c3_i32 = arith.constant 3 : i32
    %40 = vector.broadcast %c3_i32 : i32 to vector<2x128xi32>
    %41 = arith.cmpi eq, %5, %40 : vector<2x128xi32>
    %42 = vector.extract_strided_slice %7 {offsets = [3, 0, 0], sizes = [1, 2, 128], strides = [1, 1, 1]} : vector<4x2x128xf32> to vector<1x2x128xf32>
    %43 = vector.shape_cast %42 : vector<1x2x128xf32> to vector<2x128xf32>
    %44 = arith.select %41, %43, %36 : vector<2x128xi1>, vector<2x128xf32>
    %45 = vector.extract_strided_slice %12 {offsets = [3, 0, 0], sizes = [1, 2, 128], strides = [1, 1, 1]} : vector<4x2x128xf32> to vector<1x2x128xf32>
    %46 = vector.shape_cast %45 : vector<1x2x128xf32> to vector<2x128xf32>
    %47 = arith.select %41, %46, %39 : vector<2x128xi1>, vector<2x128xf32>
    %48 = math.log %13 : vector<2x128xf32>
    %49 = arith.addf %48, %8 : vector<2x128xf32>
    %50 = arith.subf %49, %44 : vector<2x128xf32>
    %51 = tpu.reciprocal %13 {approx = true} : vector<2x128xf32> -> vector<2x128xf32>
    %52 = arith.mulf %47, %51 : vector<2x128xf32>
    %cst_10 = arith.constant 0.000000e+00 : f32
    %53 = vector.broadcast %cst_10 : f32 to vector<2x128xf32>
    %54 = arith.select %3, %50, %53 : vector<2x128xi1>, vector<2x128xf32>
    %c0_11 = arith.constant 0 : index
    %c0_12 = arith.constant 0 : index
    %c0_13 = arith.constant 0 : index
    %55 = vector.load %arg5[%c0_11, %c0_12, %c0_13] : memref<1x2x128xf32, #tpu.memory_space<vmem>>, vector<1x2x128xf32>
    %56 = vector.shape_cast %55 : vector<1x2x128xf32> to vector<2x128xf32>
    %57 = vector.shape_cast %54 : vector<2x128xf32> to vector<1x2x128xf32>
    tpu.vector_store %arg5[%c0_11, %c0_12, %c0_13], %57 {strides = array<i32>} : memref<1x2x128xf32, #tpu.memory_space<vmem>>, vector<1x2x128xf32>,
    %cst_14 = arith.constant 1.000000e+00 : f32
    %58 = vector.broadcast %cst_14 : f32 to vector<2x128xf32>
    %59 = arith.select %3, %52, %58 : vector<2x128xi1>, vector<2x128xf32>
    %c0_15 = arith.constant 0 : index
    %c0_16 = arith.constant 0 : index
    %c0_17 = arith.constant 0 : index
    %60 = vector.load %arg6[%c0_15, %c0_16, %c0_17] : memref<1x2x128xf32, #tpu.memory_space<vmem>>, vector<1x2x128xf32>
    %61 = vector.shape_cast %60 : vector<1x2x128xf32> to vector<2x128xf32>
    %62 = vector.shape_cast %59 : vector<2x128xf32> to vector<1x2x128xf32>
    tpu.vector_store %arg6[%c0_15, %c0_16, %c0_17], %62 {strides = array<i32>} : memref<1x2x128xf32, #tpu.memory_space<vmem>>, vector<1x2x128xf32>,
    %c0_18 = arith.constant 0 : index
    %c0_19 = arith.constant 0 : index
    %c0_20 = arith.constant 0 : index
    %c0_21 = arith.constant 0 : index
    %63 = vector.load %arg3[%c0_18, %c0_19, %c0_20, %c0_21] : memref<1x4x2x128xf32, #tpu.memory_space<vmem>>, vector<1x4x2x128xf32>
    %64 = vector.shape_cast %63 : vector<1x4x2x128xf32> to vector<4x2x128xf32>
    %cst_22 = arith.constant dense<0xFF800000> : vector<2x128xf32>
    %65 = vector.multi_reduction <maximumf>, %64, %cst_22 [0] : vector<4x2x128xf32> to vector<2x128xf32>
    %66 = vector.shape_cast %65 : vector<2x128xf32> to vector<1x2x128xf32>
    %67 = vector.broadcast %66 : vector<1x2x128xf32> to vector<4x2x128xf32>
    %68 = arith.subf %64, %67 : vector<4x2x128xf32>
    %69 = math.exp %68 : vector<4x2x128xf32>
    %cst_23 = arith.constant dense<0.000000e+00> : vector<2x128xf32>
    %70 = vector.multi_reduction <add>, %69, %cst_23 [0] : vector<4x2x128xf32> to vector<2x128xf32>
    %cst_24 = arith.constant 0.000000e+00 : f32
    %71 = vector.broadcast %cst_24 : f32 to vector<2x128xf32>
    %cst_25 = arith.constant 0.000000e+00 : f32
    %72 = vector.broadcast %cst_25 : f32 to vector<2x128xf32>
    %c0_i32_26 = arith.constant 0 : i32
    %73 = vector.broadcast %c0_i32_26 : i32 to vector<2x128xi32>
    %74 = arith.cmpi eq, %5, %73 : vector<2x128xi32>
    %75 = vector.extract_strided_slice %64 {offsets = [0, 0, 0], sizes = [1, 2, 128], strides = [1, 1, 1]} : vector<4x2x128xf32> to vector<1x2x128xf32>
    %76 = vector.shape_cast %75 : vector<1x2x128xf32> to vector<2x128xf32>
    %77 = arith.select %74, %76, %71 : vector<2x128xi1>, vector<2x128xf32>
    %78 = vector.extract_strided_slice %69 {offsets = [0, 0, 0], sizes = [1, 2, 128], strides = [1, 1, 1]} : vector<4x2x128xf32> to vector<1x2x128xf32>
    %79 = vector.shape_cast %78 : vector<1x2x128xf32> to vector<2x128xf32>
    %80 = arith.select %74, %79, %72 : vector<2x128xi1>, vector<2x128xf32>
    %c1_i32_27 = arith.constant 1 : i32
    %81 = vector.broadcast %c1_i32_27 : i32 to vector<2x128xi32>
    %82 = arith.cmpi eq, %5, %81 : vector<2x128xi32>
    %83 = vector.extract_strided_slice %64 {offsets = [1, 0, 0], sizes = [1, 2, 128], strides = [1, 1, 1]} : vector<4x2x128xf32> to vector<1x2x128xf32>
    %84 = vector.shape_cast %83 : vector<1x2x128xf32> to vector<2x128xf32>
    %85 = arith.select %82, %84, %77 : vector<2x128xi1>, vector<2x128xf32>
    %86 = vector.extract_strided_slice %69 {offsets = [1, 0, 0], sizes = [1, 2, 128], strides = [1, 1, 1]} : vector<4x2x128xf32> to vector<1x2x128xf32>
    %87 = vector.shape_cast %86 : vector<1x2x128xf32> to vector<2x128xf32>
    %88 = arith.select %82, %87, %80 : vector<2x128xi1>, vector<2x128xf32>
    %c2_i32_28 = arith.constant 2 : i32
    %89 = vector.broadcast %c2_i32_28 : i32 to vector<2x128xi32>
    %90 = arith.cmpi eq, %5, %89 : vector<2x128xi32>
    %91 = vector.extract_strided_slice %64 {offsets = [2, 0, 0], sizes = [1, 2, 128], strides = [1, 1, 1]} : vector<4x2x128xf32> to vector<1x2x128xf32>
    %92 = vector.shape_cast %91 : vector<1x2x128xf32> to vector<2x128xf32>
    %93 = arith.select %90, %92, %85 : vector<2x128xi1>, vector<2x128xf32>
    %94 = vector.extract_strided_slice %69 {offsets = [2, 0, 0], sizes = [1, 2, 128], strides = [1, 1, 1]} : vector<4x2x128xf32> to vector<1x2x128xf32>
    %95 = vector.shape_cast %94 : vector<1x2x128xf32> to vector<2x128xf32>
    %96 = arith.select %90, %95, %88 : vector<2x128xi1>, vector<2x128xf32>
    %c3_i32_29 = arith.constant 3 : i32
    %97 = vector.broadcast %c3_i32_29 : i32 to vector<2x128xi32>
    %98 = arith.cmpi eq, %5, %97 : vector<2x128xi32>
    %99 = vector.extract_strided_slice %64 {offsets = [3, 0, 0], sizes = [1, 2, 128], strides = [1, 1, 1]} : vector<4x2x128xf32> to vector<1x2x128xf32>
    %100 = vector.shape_cast %99 : vector<1x2x128xf32> to vector<2x128xf32>
    %101 = arith.select %98, %100, %93 : vector<2x128xi1>, vector<2x128xf32>
    %102 = vector.extract_strided_slice %69 {offsets = [3, 0, 0], sizes = [1, 2, 128], strides = [1, 1, 1]} : vector<4x2x128xf32> to vector<1x2x128xf32>
    %103 = vector.shape_cast %102 : vector<1x2x128xf32> to vector<2x128xf32>
    %104 = arith.select %98, %103, %96 : vector<2x128xi1>, vector<2x128xf32>
    %105 = math.log %70 : vector<2x128xf32>
    %106 = arith.addf %105, %65 : vector<2x128xf32>
    %107 = arith.subf %106, %101 : vector<2x128xf32>
    %108 = tpu.reciprocal %70 {approx = true} : vector<2x128xf32> -> vector<2x128xf32>
    %109 = arith.mulf %104, %108 : vector<2x128xf32>
    %cst_30 = arith.constant 0.000000e+00 : f32
    %110 = vector.broadcast %cst_30 : f32 to vector<2x128xf32>
    %111 = arith.select %3, %107, %110 : vector<2x128xi1>, vector<2x128xf32>
    %c0_31 = arith.constant 0 : index
    %c0_32 = arith.constant 0 : index
    %c0_33 = arith.constant 0 : index
    %112 = vector.load %arg7[%c0_31, %c0_32, %c0_33] : memref<1x2x128xf32, #tpu.memory_space<vmem>>, vector<1x2x128xf32>
    %113 = vector.shape_cast %112 : vector<1x2x128xf32> to vector<2x128xf32>
    %114 = vector.shape_cast %111 : vector<2x128xf32> to vector<1x2x128xf32>
    tpu.vector_store %arg7[%c0_31, %c0_32, %c0_33], %114 {strides = array<i32>} : memref<1x2x128xf32, #tpu.memory_space<vmem>>, vector<1x2x128xf32>,
    %cst_34 = arith.constant 1.000000e+00 : f32
    %115 = vector.broadcast %cst_34 : f32 to vector<2x128xf32>
    %116 = arith.select %3, %109, %115 : vector<2x128xi1>, vector<2x128xf32>
    %c0_35 = arith.constant 0 : index
    %c0_36 = arith.constant 0 : index
    %c0_37 = arith.constant 0 : index
    %117 = vector.load %arg8[%c0_35, %c0_36, %c0_37] : memref<1x2x128xf32, #tpu.memory_space<vmem>>, vector<1x2x128xf32>
    %118 = vector.shape_cast %117 : vector<1x2x128xf32> to vector<2x128xf32>
    %119 = vector.shape_cast %116 : vector<2x128xf32> to vector<1x2x128xf32>
    tpu.vector_store %arg8[%c0_35, %c0_36, %c0_37], %119 {strides = array<i32>} : memref<1x2x128xf32, #tpu.memory_space<vmem>>, vector<1x2x128xf32>,
    return
  }
  func.func @transform_0(%arg0: i32, %arg1: i32) -> (i32, i32, i32, i32) {
    %c0_i32 = arith.constant 0 : i32
    %c0_i32_0 = arith.constant 0 : i32
    %c0_i32_1 = arith.constant 0 : i32
    return %arg0, %c0_i32, %arg1, %c0_i32_0 : i32, i32, i32, i32
  }
  func.func @transform_1(%arg0: i32, %arg1: i32) -> (i32, i32, i32, i32) {
    %c0_i32 = arith.constant 0 : i32
    %c0_i32_0 = arith.constant 0 : i32
    %c0_i32_1 = arith.constant 0 : i32
    return %arg0, %c0_i32, %arg1, %c0_i32_0 : i32, i32, i32, i32
  }
  func.func @transform_2(%arg0: i32, %arg1: i32) -> (i32, i32, i32) {
    %c0_i32 = arith.constant 0 : i32
    %c0_i32_0 = arith.constant 0 : i32
    return %arg0, %arg1, %c0_i32 : i32, i32, i32
  }
  func.func @transform_3(%arg0: i32, %arg1: i32) -> (i32, i32, i32) {
    %c0_i32 = arith.constant 0 : i32
    %c0_i32_0 = arith.constant 0 : i32
    return %arg0, %arg1, %c0_i32 : i32, i32, i32
  }
  func.func @transform_4(%arg0: i32, %arg1: i32) -> (i32, i32, i32) {
    %c0_i32 = arith.constant 0 : i32
    %c0_i32_0 = arith.constant 0 : i32
    return %arg0, %arg1, %c0_i32 : i32, i32, i32
  }
  func.func @transform_5(%arg0: i32, %arg1: i32) -> (i32, i32, i32) {
    %c0_i32 = arith.constant 0 : i32
    %c0_i32_0 = arith.constant 0 : i32
    return %arg0, %arg1, %c0_i32 : i32, i32, i32
  }
  func.func @transform_6(%arg0: i32, %arg1: i32) -> (i32, i32, i32) {
    %c0_i32 = arith.constant 0 : i32
    %c0_i32_0 = arith.constant 0 : i32
    return %arg0, %arg1, %c0_i32 : i32, i32, i32
  }
}

</mosaic_0001>

<llo_original>
// kernel: neg.0
$region0: #{neg.0}
  #allocation0 [shape = 's32[1]{0}', space=sflag, size = 0x4, scoped, tag = 'scoped memory for neg.0']
  %s0 = inlined_call_operand.vmem [shape: f32[2,2,128], index: 0, kind: input, shape index: {}]
  %s1 = inlined_call_operand.vmem [shape: f32[2,2,128], index: 1, kind: output, shape index: {}]
  %v2 = vld [vmem:[%s0] sm:$0x3]
  %3 = xla_tuple %v2
  %4 = xla_tuple %3
  %v5 = vxor.u32 %v2, 2147483648
  %6 = xla_tuple %v5
  %7 = vst [vmem:[%s1] sm:$0x3] %v5
  %s8 = scalar_lea.vmem %s0, 2
  %v9 = vld [vmem:[%s8] sm:$0x3]
  %10 = xla_tuple %v9
  %11 = xla_tuple %10
  %v12 = vxor.u32 %v9, 2147483648
  %13 = xla_tuple %v12
  %s14 = scalar_lea.vmem %s1, 2
  %15 = vst [vmem:[%s14] sm:$0x3] %v12

// kernel: criterion_ohem.1
$region0: #{criterion_ohem.1}
  #allocation0 [shape = 'u32[]', space=smem, size = 0x4, offset = 0x4, fixed_abs, tag = 'smem constant byte address 0x4 - core index']
  #allocation1 [shape = 'u32[72,128]{1,0:T(1,128)}', space=vmem, size = 0x9000, scoped, tag = 'internal scratch']
  %s0 = inlined_call_operand.vmem [shape: f32[2,4,2,128], index: 0, kind: input, shape index: {}]
  %s1 = inlined_call_operand.vmem [shape: f32[2,4,2,128], index: 1, kind: input, shape index: {}]
  %s2 = inlined_call_operand.vmem [shape: s32[2,2,128], index: 2, kind: input, shape index: {}]
  %s3 = inlined_call_operand.vmem [shape: f32[2,2,128], index: 3, kind: output, shape index: {0}]
  %s4 = inlined_call_operand.vmem [shape: f32[2,2,128], index: 4, kind: output, shape index: {1}]
  %s5 = inlined_call_operand.vmem [shape: f32[2,2,128], index: 5, kind: output, shape index: {2}]
  %s6 = inlined_call_operand.vmem [shape: f32[2,2,128], index: 6, kind: output, shape index: {3}]
  %7 = xla_tuple %s3, %s4, %s5, %s6
  %s8 = sld [smem:[#allocation0]]
  $region69: #{criterion_ohem.1} parent=0
    _
  %s10 = ssub.s32 1, %s8
  %s11 = scalar_select 0, %s10, %s8
  loop: start=0, step=1, limit=4
  $region2: #{criterion_ohem.1} parent=0 // loop_pre_header
    _
  $region3: #{criterion_ohem.1} parent=0 // loop_header
    %s13 = sphi 0, %s17
    %p14 = scmp.ge.s32.totalorder %s13, 4
    %s20 = sphi 0, %s32
    %s21 = sphi 0, %s28
    %s22 = sphi 0, %s20
    %s23 = sphi 0, %s21
    %s24 = sphi 0, %s22
    %s25 = sphi 0, %s23
    %s37 = sphi 0, %s39
    %s40 = sphi 0, %s37
    %s41 = sphi 0, %s40
    %s57 = sphi 0, %s41
    %s65 = sphi 0, %s67
    %s68 = sphi 0, %s65
    %s69 = sphi 0, %s68
    %s85 = sphi 0, %s69
    %s93 = sphi 0, %s95
    %s96 = sphi 0, %s93
    %s97 = sphi 0, %s96
    %s113 = sphi 0, %s97
    %s121 = sphi 0, %s123
    %s124 = sphi 0, %s121
    %s125 = sphi 0, %s124
    %s141 = sphi 0, %s125
    %s149 = sphi 0, %s151
    %s152 = sphi 0, %s149
    %s153 = sphi 0, %s152
    %s169 = sphi 0, %s153
    %s177 = sphi 0, %s179
    %s180 = sphi 0, %s177
    %s181 = sphi 0, %s180
    %s197 = sphi 0, %s181
    %s205 = sphi 0, %s207
    %s208 = sphi 0, %s205
    %s209 = sphi 0, %s208
    %s225 = sphi 0, %s209
  $region4: #{criterion_ohem.1} parent=0 // loop_header_branch
    %16 = sbr.rel (%p14) target = $region8
  $region5: #{criterion_ohem.1} parent=0 // loop_body
    %s18 = ssub.s32 %s13, 1
    %s19 = ssub.s32 %s13, 2
    %s26 = sadd.s32 1, %s21
    %p27 = scmp.ge.s32.totalorder %s26, 1
    %s28 = scalar_select %p27, 0, %s26
    %s29 = sadd.s32 1, %s20
    %s30 = scalar_select %p27, %s29, %s20
    %p31 = scmp.ge.s32.totalorder %s30, 2
    %s32 = scalar_select %p31, 0, %s30
    %s33 = ssub.s32 %s20, %s32
    %s34 = ssub.s32 %s21, %s28
    %s35 = sor.u32 %s33, %s34
    %p36 = scmp.eq.s32.totalorder %s35, 0
    %s38 = sadd.s32 %s37, 1
    %s39 = scalar_select %p36, %s37, %s38
    %p42 = pneg %p36
    %p43 = scmp.eq.s32.totalorder %s13, 1
    %p44 = por %p42, %p43
    %p45 = scmp.ne.s32.totalorder %s37, %s40
    %p46 = scmp.eq.s32.totalorder %s13, 0
    %p47 = por %p45, %p46
    %p48 = scmp.ne.s32.totalorder %s37, %s40
    %p49 = scmp.eq.s32.totalorder %s18, 1
    %p50 = por %p48, %p49
    %p51 = scmp.ne.s32.totalorder %s40, %s41
    %p52 = scmp.eq.s32.totalorder %s18, 0
    %p53 = por %p51, %p52
    %p54 = scmp.ne.s32.totalorder %s40, %s41
    %p55 = scmp.eq.s32.totalorder %s19, 1
    %p56 = por %p54, %p55
    %p58 = scmp.ne.s32.totalorder %s41, %s57
    %p59 = scmp.eq.s32.totalorder %s19, 0
    %p60 = por %p58, %p59
    %s61 = ssub.s32 %s20, %s32
    %s62 = ssub.s32 %s21, %s28
    %s63 = sor.u32 %s61, %s62
    %p64 = scmp.eq.s32.totalorder %s63, 0
    %s66 = sadd.s32 %s65, 1
    %s67 = scalar_select %p64, %s65, %s66
    %p70 = pneg %p64
    %p71 = scmp.eq.s32.totalorder %s13, 1
    %p72 = por %p70, %p71
    %p73 = scmp.ne.s32.totalorder %s65, %s68
    %p74 = scmp.eq.s32.totalorder %s13, 0
    %p75 = por %p73, %p74
    %p76 = scmp.ne.s32.totalorder %s65, %s68
    %p77 = scmp.eq.s32.totalorder %s18, 1
    %p78 = por %p76, %p77
    %p79 = scmp.ne.s32.totalorder %s68, %s69
    %p80 = scmp.eq.s32.totalorder %s18, 0
    %p81 = por %p79, %p80
    %p82 = scmp.ne.s32.totalorder %s68, %s69
    %p83 = scmp.eq.s32.totalorder %s19, 1
    %p84 = por %p82, %p83
    %p86 = scmp.ne.s32.totalorder %s69, %s85
    %p87 = scmp.eq.s32.totalorder %s19, 0
    %p88 = por %p86, %p87
    %s89 = ssub.s32 %s20, %s32
    %s90 = ssub.s32 %s21, %s28
    %s91 = sor.u32 %s89, %s90
    %p92 = scmp.eq.s32.totalorder %s91, 0
    %s94 = sadd.s32 %s93, 1
    %s95 = scalar_select %p92, %s93, %s94
    %p98 = pneg %p92
    %p99 = scmp.eq.s32.totalorder %s13, 1
    %p100 = por %p98, %p99
    %p101 = scmp.ne.s32.totalorder %s93, %s96
    %p102 = scmp.eq.s32.totalorder %s13, 0
    %p103 = por %p101, %p102
    %p104 = scmp.ne.s32.totalorder %s93, %s96
    %p105 = scmp.eq.s32.totalorder %s18, 1
    %p106 = por %p104, %p105
    %p107 = scmp.ne.s32.totalorder %s96, %s97
    %p108 = scmp.eq.s32.totalorder %s18, 0
    %p109 = por %p107, %p108
    %p110 = scmp.ne.s32.totalorder %s96, %s97
    %p111 = scmp.eq.s32.totalorder %s19, 1
    %p112 = por %p110, %p111
    %p114 = scmp.ne.s32.totalorder %s97, %s113
    %p115 = scmp.eq.s32.totalorder %s19, 0
    %p116 = por %p114, %p115
    %s117 = ssub.s32 %s20, %s32
    %s118 = ssub.s32 %s21, %s28
    %s119 = sor.u32 %s117, %s118
    %p120 = scmp.eq.s32.totalorder %s119, 0
    %s122 = sadd.s32 %s121, 1
    %s123 = scalar_select %p120, %s121, %s122
    %p126 = pneg %p120
    %p127 = scmp.eq.s32.totalorder %s13, 1
    %p128 = por %p126, %p127
    %p129 = scmp.ne.s32.totalorder %s121, %s124
    %p130 = scmp.eq.s32.totalorder %s13, 0
    %p131 = por %p129, %p130
    %p132 = scmp.ne.s32.totalorder %s121, %s124
    %p133 = scmp.eq.s32.totalorder %s18, 1
    %p134 = por %p132, %p133
    %p135 = scmp.ne.s32.totalorder %s124, %s125
    %p136 = scmp.eq.s32.totalorder %s18, 0
    %p137 = por %p135, %p136
    %p138 = scmp.ne.s32.totalorder %s124, %s125
    %p139 = scmp.eq.s32.totalorder %s19, 1
    %p140 = por %p138, %p139
    %p142 = scmp.ne.s32.totalorder %s125, %s141
    %p143 = scmp.eq.s32.totalorder %s19, 0
    %p144 = por %p142, %p143
    %s145 = ssub.s32 %s20, %s32
    %s146 = ssub.s32 %s21, %s28
    %s147 = sor.u32 %s145, %s146
    %p148 = scmp.eq.s32.totalorder %s147, 0
    %s150 = sadd.s32 %s149, 1
    %s151 = scalar_select %p148, %s149, %s150
    %p154 = pneg %p148
    %p155 = scmp.eq.s32.totalorder %s13, 1
    %p156 = por %p154, %p155
    %p157 = scmp.ne.s32.totalorder %s149, %s152
    %p158 = scmp.eq.s32.totalorder %s13, 0
    %p159 = por %p157, %p158
    %p160 = scmp.ne.s32.totalorder %s149, %s152
    %p161 = scmp.eq.s32.totalorder %s18, 1
    %p162 = por %p160, %p161
    %p163 = scmp.ne.s32.totalorder %s152, %s153
    %p164 = scmp.eq.s32.totalorder %s18, 0
    %p165 = por %p163, %p164
    %p166 = scmp.ne.s32.totalorder %s152, %s153
    %p167 = scmp.eq.s32.totalorder %s19, 1
    %p168 = por %p166, %p167
    %p170 = scmp.ne.s32.totalorder %s153, %s169
    %p171 = scmp.eq.s32.totalorder %s19, 0
    %p172 = por %p170, %p171
    %s173 = ssub.s32 %s20, %s32
    %s174 = ssub.s32 %s21, %s28
    %s175 = sor.u32 %s173, %s174
    %p176 = scmp.eq.s32.totalorder %s175, 0
    %s178 = sadd.s32 %s177, 1
    %s179 = scalar_select %p176, %s177, %s178
    %p182 = pneg %p176
    %p183 = scmp.eq.s32.totalorder %s13, 1
    %p184 = por %p182, %p183
    %p185 = scmp.ne.s32.totalorder %s177, %s180
    %p186 = scmp.eq.s32.totalorder %s13, 0
    %p187 = por %p185, %p186
    %p188 = scmp.ne.s32.totalorder %s177, %s180
    %p189 = scmp.eq.s32.totalorder %s18, 1
    %p190 = por %p188, %p189
    %p191 = scmp.ne.s32.totalorder %s180, %s181
    %p192 = scmp.eq.s32.totalorder %s18, 0
    %p193 = por %p191, %p192
    %p194 = scmp.ne.s32.totalorder %s180, %s181
    %p195 = scmp.eq.s32.totalorder %s19, 1
    %p196 = por %p194, %p195
    %p198 = scmp.ne.s32.totalorder %s181, %s197
    %p199 = scmp.eq.s32.totalorder %s19, 0
    %p200 = por %p198, %p199
    %s201 = ssub.s32 %s20, %s32
    %s202 = ssub.s32 %s21, %s28
    %s203 = sor.u32 %s201, %s202
    %p204 = scmp.eq.s32.totalorder %s203, 0
    %s206 = sadd.s32 %s205, 1
    %s207 = scalar_select %p204, %s205, %s206
    %p210 = pneg %p204
    %p211 = scmp.eq.s32.totalorder %s13, 1
    %p212 = por %p210, %p211
    %p213 = scmp.ne.s32.totalorder %s205, %s208
    %p214 = scmp.eq.s32.totalorder %s13, 0
    %p215 = por %p213, %p214
    %p216 = scmp.ne.s32.totalorder %s205, %s208
    %p217 = scmp.eq.s32.totalorder %s18, 1
    %p218 = por %p216, %p217
    %p219 = scmp.ne.s32.totalorder %s208, %s209
    %p220 = scmp.eq.s32.totalorder %s18, 0
    %p221 = por %p219, %p220
    %p222 = scmp.ne.s32.totalorder %s208, %s209
    %p223 = scmp.eq.s32.totalorder %s19, 1
    %p224 = por %p222, %p223
    %p226 = scmp.ne.s32.totalorder %s209, %s225
    %p227 = scmp.eq.s32.totalorder %s19, 0
    %p228 = por %p226, %p227
    %p229 = scmp.le.s32.totalorder 1, %s13
    %p230 = scmp.lt.s32.totalorder %s13, 3
    %p231 = pnand %p229, %p230
    %p232 = pneg %p231
    // Predicated region
    $region9: #{criterion_ohem.1} parent=5 // pred_check
      _
    $region10: #{criterion_ohem.1} parent=5 // pred_check_branch
      %234 = sbr.rel (%p231) target = $region12
    $region11: #{criterion_ohem.1} parent=5 // pred_region
      %s235 = ssub.s32 %s13, 1
    $region12: #{criterion_ohem.1} parent=5 // pred_fallthru
      _
    %p236 = scmp.lt.s32.totalorder %s13, 2
    // Predicated region
    $region13: #{criterion_ohem.1} parent=5 // pred_check
      %p237 = pneg %p236
    $region14: #{criterion_ohem.1} parent=5 // pred_check_branch
      %239 = sbr.rel (%p237) target = $region16
    $region15: #{criterion_ohem.1} parent=5 // pred_region
      // Predicated region
      $region17: #{criterion_ohem.1} parent=15 // pred_check
        %p240 = pneg %p47
      $region18: #{criterion_ohem.1} parent=15 // pred_check_branch
        %242 = sbr.rel (%p240) target = $region20
      $region19: #{criterion_ohem.1} parent=15 // pred_region
        %p243 = scmp.lt.s32.totalorder %s20, 1
        %s244 = scalar_select %p243, %s20, 1
        %p245 = scmp.lt.s32.totalorder %s21, 0
        %s246 = scalar_select %p245, %s21, 0
        %s247 = smul.addr %s244, 4
        %s248 = sadd.s32 %s246, %s247
        %s249 = smul.addr %s248, 2
        %s250 = scalar_lea.vmem %s0, %s249
      $region20: #{criterion_ohem.1} parent=15 // pred_fallthru
        _
      // Predicated region
      $region21: #{criterion_ohem.1} parent=15 // pred_check
        %p251 = pneg %p75
      $region22: #{criterion_ohem.1} parent=15 // pred_check_branch
        %253 = sbr.rel (%p251) target = $region24
      $region23: #{criterion_ohem.1} parent=15 // pred_region
        %p254 = scmp.lt.s32.totalorder %s20, 1
        %s255 = scalar_select %p254, %s20, 1
        %p256 = scmp.lt.s32.totalorder %s21, 0
        %s257 = scalar_select %p256, %s21, 0
        %s258 = smul.addr %s255, 4
        %s259 = sadd.s32 %s257, %s258
        %s260 = smul.addr %s259, 2
        %s261 = scalar_lea.vmem %s1, %s260
      $region24: #{criterion_ohem.1} parent=15 // pred_fallthru
        _
      // Predicated region
      $region25: #{criterion_ohem.1} parent=15 // pred_check
        %p262 = pneg %p103
      $region26: #{criterion_ohem.1} parent=15 // pred_check_branch
        %264 = sbr.rel (%p262) target = $region28
      $region27: #{criterion_ohem.1} parent=15 // pred_region
        %p265 = scmp.lt.s32.totalorder %s20, 1
        %s266 = scalar_select %p265, %s20, 1
        %p267 = scmp.lt.s32.totalorder %s21, 0
        %s268 = scalar_select %p267, %s21, 0
        %s269 = sadd.s32 %s268, %s266
        %s270 = smul.addr %s269, 2
        %s271 = scalar_lea.vmem %s2, %s270
      $region28: #{criterion_ohem.1} parent=15 // pred_fallthru
        _
    $region16: #{criterion_ohem.1} parent=5 // pred_fallthru
      _
    %p272 = scmp.le.s32.totalorder 1, %s13
    %p273 = scmp.lt.s32.totalorder %s13, 3
    %p274 = pnand %p272, %p273
    %p275 = pneg %p274
    // Predicated region
    $region29: #{criterion_ohem.1} parent=5 // pred_check
      _
    $region30: #{criterion_ohem.1} parent=5 // pred_check_branch
      %277 = sbr.rel (%p274) target = $region32
    $region31: #{criterion_ohem.1} parent=5 // pred_region
      %s278 = ssub.s32 %s13, 1
      %p279 = scmp.lt.s32.totalorder %s22, 1
      %s280 = scalar_select %p279, %s22, 1
      %p281 = scmp.lt.s32.totalorder %s23, 0
      %s282 = scalar_select %p281, %s23, 0
      %s283 = smul.addr %s280, 4
      %s284 = sadd.s32 %s282, %s283
      %s285 = smul.addr %s284, 2
      %s286 = scalar_lea.vmem %s0, %s285
      %p287 = pneg %p53
      %p288 = pneg %p50
      %p289 = scmp.lt.s32.totalorder %s22, 1
      %s290 = scalar_select %p289, %s22, 1
      %p291 = scmp.lt.s32.totalorder %s23, 0
      %s292 = scalar_select %p291, %s23, 0
      %s293 = smul.addr %s290, 4
      %s294 = sadd.s32 %s292, %s293
      %s295 = smul.addr %s294, 2
      %s296 = scalar_lea.vmem %s1, %s295
      %p297 = pneg %p81
      %p298 = pneg %p78
      %p299 = scmp.lt.s32.totalorder %s22, 1
      %s300 = scalar_select %p299, %s22, 1
      %p301 = scmp.lt.s32.totalorder %s23, 0
      %s302 = scalar_select %p301, %s23, 0
      %s303 = sadd.s32 %s302, %s300
      %s304 = smul.addr %s303, 2
      %s305 = scalar_lea.vmem %s2, %s304
      %p306 = pneg %p109
      %p307 = pneg %p106
      %p308 = pneg %p137
      %p309 = pneg %p134
      %p310 = scmp.lt.s32.totalorder %s22, 1
      %s311 = scalar_select %p310, %s22, 1
      %p312 = scmp.lt.s32.totalorder %s23, 0
      %s313 = scalar_select %p312, %s23, 0
      %s314 = sadd.s32 %s313, %s311
      %s315 = smul.addr %s314, 2
      %s316 = scalar_lea.vmem %s3, %s315
      %p317 = pneg %p165
      %p318 = pneg %p162
      %p319 = scmp.lt.s32.totalorder %s22, 1
      %s320 = scalar_select %p319, %s22, 1
      %p321 = scmp.lt.s32.totalorder %s23, 0
      %s322 = scalar_select %p321, %s23, 0
      %s323 = sadd.s32 %s322, %s320
      %s324 = smul.addr %s323, 2
      %s325 = scalar_lea.vmem %s4, %s324
      %p326 = pneg %p193
      %p327 = pneg %p190
      %p328 = scmp.lt.s32.totalorder %s22, 1
      %s329 = scalar_select %p328, %s22, 1
      %p330 = scmp.lt.s32.totalorder %s23, 0
      %s331 = scalar_select %p330, %s23, 0
      %s332 = sadd.s32 %s331, %s329
      %s333 = smul.addr %s332, 2
      %s334 = scalar_lea.vmem %s5, %s333
      %p335 = pneg %p221
      %p336 = pneg %p218
      %p337 = scmp.lt.s32.totalorder %s22, 1
      %s338 = scalar_select %p337, %s22, 1
      %p339 = scmp.lt.s32.totalorder %s23, 0
      %s340 = scalar_select %p339, %s23, 0
      %s341 = sadd.s32 %s340, %s338
      %s342 = smul.addr %s341, 2
      %s343 = scalar_lea.vmem %s6, %s342
      %p344 = scmp.lt.s32.totalorder %s22, 1
      %s345 = scalar_select %p344, %s22, 1
      %p346 = scmp.lt.s32.totalorder %s23, 0
      %s347 = scalar_select %p346, %s23, 0
      %s348 = smul.addr %s345, 4
      %s349 = sadd.s32 %s347, %s348
      %s350 = smul.addr %s349, 2
      %s351 = scalar_lea.vmem %s0, %s350
      %p352 = scmp.lt.s32.totalorder %s22, 1
      %s353 = scalar_select %p352, %s22, 1
      %p354 = scmp.lt.s32.totalorder %s23, 0
      %s355 = scalar_select %p354, %s23, 0
      %s356 = smul.addr %s353, 4
      %s357 = sadd.s32 %s355, %s356
      %s358 = smul.addr %s357, 2
      %s359 = scalar_lea.vmem %s1, %s358
      %p360 = scmp.lt.s32.totalorder %s22, 1
      %s361 = scalar_select %p360, %s22, 1
      %p362 = scmp.lt.s32.totalorder %s23, 0
      %s363 = scalar_select %p362, %s23, 0
      %s364 = sadd.s32 %s363, %s361
      %s365 = smul.addr %s364, 2
      %s366 = scalar_lea.vmem %s2, %s365
      %p367 = scmp.lt.s32.totalorder %s22, 1
      %s368 = scalar_select %p367, %s22, 1
      %p369 = scmp.lt.s32.totalorder %s23, 0
      %s370 = scalar_select %p369, %s23, 0
      %s371 = sadd.s32 %s370, %s368
      %s372 = smul.addr %s371, 2
      %s373 = scalar_lea.vmem %s3, %s372
      %p374 = scmp.lt.s32.totalorder %s22, 1
      %s375 = scalar_select %p374, %s22, 1
      %p376 = scmp.lt.s32.totalorder %s23, 0
      %s377 = scalar_select %p376, %s23, 0
      %s378 = sadd.s32 %s377, %s375
      %s379 = smul.addr %s378, 2
      %s380 = scalar_lea.vmem %s4, %s379
      %p381 = scmp.lt.s32.totalorder %s22, 1
      %s382 = scalar_select %p381, %s22, 1
      %p383 = scmp.lt.s32.totalorder %s23, 0
      %s384 = scalar_select %p383, %s23, 0
      %s385 = sadd.s32 %s384, %s382
      %s386 = smul.addr %s385, 2
      %s387 = scalar_lea.vmem %s5, %s386
      %p388 = scmp.lt.s32.totalorder %s22, 1
      %s389 = scalar_select %p388, %s22, 1
      %p390 = scmp.lt.s32.totalorder %s23, 0
      %s391 = scalar_select %p390, %s23, 0
      %s392 = sadd.s32 %s391, %s389
      %s393 = smul.addr %s392, 2
      %s394 = scalar_lea.vmem %s6, %s393
      %v395 = vld [vmem:[%s366] sm:$0x3]
      %vm396 = vcmp.ne.s32.totalorder %v395, 255
      %v397 = vsel %vm396, %v395, 0
      %v398 = vld [vmem:[%s351] sm:$0x3]
      %v399 = vld [vmem:[%s351 + $0x2] sm:$0x3]
      %v400 = vld [vmem:[%s351 + $0x4] sm:$0x3]
      %v401 = vld [vmem:[%s351 + $0x6] sm:$0x3]
      %vm402 = vcmask 1041408
      %v403 = vsel %vm402, %v398, -inf
      %v404 = vsel %vm402, %v399, -inf
      %v405 = vsel %vm402, %v400, -inf
      %v406 = vsel %vm402, %v401, -inf
      %v407 = vmax.f32 %v403, %v404
      %v408 = vmax.f32 %v405, %v406
      %v409 = vmax.f32 %v407, %v408
      %v410 = vsub.f32 %v398, %v409
      %v411 = vsub.f32 %v399, %v409
      %v412 = vsub.f32 %v400, %v409
      %v413 = vsub.f32 %v401, %v409
      %v414 = vmul.f32 %v410, 1.442695
      %v415 = vpow.pop %v414
      %v416 = vmul.f32 %v411, 1.442695
      %v417 = vpow.pop %v416
      %v418 = vmul.f32 %v412, 1.442695
      %v419 = vpow.pop %v418
      %v420 = vmul.f32 %v413, 1.442695
      %v421 = vpow.pop %v420
      %v422 = vsel %vm402, %v415, 0.0
      %v423 = vsel %vm402, %v417, 0.0
      %v424 = vadd.f32 %v422, %v423
      %v425 = vsel %vm402, %v419, 0.0
      %v426 = vadd.f32 %v424, %v425
      %v427 = vsel %vm402, %v421, 0.0
      %v428 = vadd.f32 %v426, %v427
      %vm429 = vcmp.eq.s32.totalorder %v397, 0
      %v430 = vsel %vm429, %v398, 0.0
      %v431 = vsel %vm429, %v415, 0.0
      %vm432 = vcmp.eq.s32.totalorder %v397, 1
      %v433 = vsel %vm432, %v399, %v430
      %v434 = vsel %vm432, %v417, %v431
      %vm435 = vcmp.eq.s32.totalorder %v397, 2
      %v436 = vsel %vm435, %v400, %v433
      %v437 = vsel %vm435, %v419, %v434
      %vm438 = vcmp.eq.s32.totalorder %v397, 3
      %v439 = vsel %vm438, %v401, %v436
      %v440 = vsel %vm438, %v421, %v437
      %v441 = vlog2.pop %v428
      %v442 = vmul.f32 %v441, 0.6931472
      %v443 = vadd.f32 %v442, %v409
      %v444 = vsub.f32 %v443, %v439
      %v445 = vrcp.pop %v428
      %v446 = vmul.f32 %v440, %v445
      %v447 = vsel %vm396, %v444, 0.0
      %448 = vst [vmem:[%s373] sm:$0x3] %v447
      %v449 = vsel %vm396, %v446, 1.0
      %450 = vst [vmem:[%s380] sm:$0x3] %v449
      %v451 = vld [vmem:[%s359] sm:$0x3]
      %v452 = vld [vmem:[%s359 + $0x2] sm:$0x3]
      %v453 = vld [vmem:[%s359 + $0x4] sm:$0x3]
      %v454 = vld [vmem:[%s359 + $0x6] sm:$0x3]
      %v455 = vsel %vm402, %v451, -inf
      %v456 = vsel %vm402, %v452, -inf
      %v457 = vsel %vm402, %v453, -inf
      %v458 = vsel %vm402, %v454, -inf
      %v459 = vmax.f32 %v455, %v456
      %v460 = vmax.f32 %v457, %v458
      %v461 = vmax.f32 %v459, %v460
      %v462 = vsub.f32 %v451, %v461
      %v463 = vsub.f32 %v452, %v461
      %v464 = vsub.f32 %v453, %v461
      %v465 = vsub.f32 %v454, %v461
      %v466 = vmul.f32 %v462, 1.442695
      %v467 = vpow.pop %v466
      %v468 = vmul.f32 %v463, 1.442695
      %v469 = vpow.pop %v468
      %v470 = vmul.f32 %v464, 1.442695
      %v471 = vpow.pop %v470
      %v472 = vmul.f32 %v465, 1.442695
      %v473 = vpow.pop %v472
      %v474 = vsel %vm402, %v467, 0.0
      %v475 = vsel %vm402, %v469, 0.0
      %v476 = vadd.f32 %v474, %v475
      %v477 = vsel %vm402, %v471, 0.0
      %v478 = vadd.f32 %v476, %v477
      %v479 = vsel %vm402, %v473, 0.0
      %v480 = vadd.f32 %v478, %v479
      %v481 = vsel %vm429, %v451, 0.0
      %v482 = vsel %vm429, %v467, 0.0
      %v483 = vsel %vm432, %v452, %v481
      %v484 = vsel %vm432, %v469, %v482
      %v485 = vsel %vm435, %v453, %v483
      %v486 = vsel %vm435, %v471, %v484
      %v487 = vsel %vm438, %v454, %v485
      %v488 = vsel %vm438, %v473, %v486
      %v489 = vlog2.pop %v480
      %v490 = vmul.f32 %v489, 0.6931472
      %v491 = vadd.f32 %v490, %v461
      %v492 = vsub.f32 %v491, %v487
      %v493 = vrcp.pop %v480
      %v494 = vmul.f32 %v488, %v493
      %v495 = vsel %vm396, %v492, 0.0
      %496 = vst [vmem:[%s387] sm:$0x3] %v495
      %v497 = vsel %vm396, %v494, 1.0
      %498 = vst [vmem:[%s394] sm:$0x3] %v497
      %p499 = scmp.lt.s32.totalorder %s22, 1
      %s500 = scalar_select %p499, %s22, 1
      %p501 = scmp.lt.s32.totalorder %s23, 0
      %s502 = scalar_select %p501, %s23, 0
      %s503 = sadd.s32 %s502, %s500
      %s504 = smul.addr %s503, 2
      %s505 = scalar_lea.vmem %s3, %s504
      %p506 = scmp.lt.s32.totalorder %s22, 1
      %s507 = scalar_select %p506, %s22, 1
      %p508 = scmp.lt.s32.totalorder %s23, 0
      %s509 = scalar_select %p508, %s23, 0
      %s510 = sadd.s32 %s509, %s507
      %s511 = smul.addr %s510, 2
      %s512 = scalar_lea.vmem %s4, %s511
      %p513 = scmp.lt.s32.totalorder %s22, 1
      %s514 = scalar_select %p513, %s22, 1
      %p515 = scmp.lt.s32.totalorder %s23, 0
      %s516 = scalar_select %p515, %s23, 0
      %s517 = sadd.s32 %s516, %s514
      %s518 = smul.addr %s517, 2
      %s519 = scalar_lea.vmem %s5, %s518
      %p520 = scmp.lt.s32.totalorder %s22, 1
      %s521 = scalar_select %p520, %s22, 1
      %p522 = scmp.lt.s32.totalorder %s23, 0
      %s523 = scalar_select %p522, %s23, 0
      %s524 = sadd.s32 %s523, %s521
      %s525 = smul.addr %s524, 2
      %s526 = scalar_lea.vmem %s6, %s525
      // Predicated region
      $region33: #{criterion_ohem.1} parent=31 // pred_check
        %p527 = pneg %p134
      $region34: #{criterion_ohem.1} parent=31 // pred_check_branch
        %529 = sbr.rel (%p527) target = $region36
      $region35: #{criterion_ohem.1} parent=31 // pred_region
        _
      $region36: #{criterion_ohem.1} parent=31 // pred_fallthru
        _
      // Predicated region
      $region37: #{criterion_ohem.1} parent=31 // pred_check
        %p530 = pneg %p162
      $region38: #{criterion_ohem.1} parent=31 // pred_check_branch
        %532 = sbr.rel (%p530) target = $region40
      $region39: #{criterion_ohem.1} parent=31 // pred_region
        _
      $region40: #{criterion_ohem.1} parent=31 // pred_fallthru
        _
      // Predicated region
      $region41: #{criterion_ohem.1} parent=31 // pred_check
        %p533 = pneg %p190
      $region42: #{criterion_ohem.1} parent=31 // pred_check_branch
        %535 = sbr.rel (%p533) target = $region44
      $region43: #{criterion_ohem.1} parent=31 // pred_region
        _
      $region44: #{criterion_ohem.1} parent=31 // pred_fallthru
        _
      // Predicated region
      $region45: #{criterion_ohem.1} parent=31 // pred_check
        %p536 = pneg %p218
      $region46: #{criterion_ohem.1} parent=31 // pred_check_branch
        %538 = sbr.rel (%p536) target = $region48
      $region47: #{criterion_ohem.1} parent=31 // pred_region
        _
      $region48: #{criterion_ohem.1} parent=31 // pred_fallthru
        _
    $region32: #{criterion_ohem.1} parent=5 // pred_fallthru
      _
    %p539 = scmp.le.s32.totalorder 2, %s13
    // Predicated region
    $region49: #{criterion_ohem.1} parent=5 // pred_check
      %p540 = pneg %p539
    $region50: #{criterion_ohem.1} parent=5 // pred_check_branch
      %542 = sbr.rel (%p540) target = $region52
    $region51: #{criterion_ohem.1} parent=5 // pred_region
      %s543 = ssub.s32 %s13, 2
      // Predicated region
      $region53: #{criterion_ohem.1} parent=51 // pred_check
        %p544 = pneg %p140
      $region54: #{criterion_ohem.1} parent=51 // pred_check_branch
        %546 = sbr.rel (%p544) target = $region56
      $region55: #{criterion_ohem.1} parent=51 // pred_region
        %p547 = scmp.lt.s32.totalorder %s24, 1
        %s548 = scalar_select %p547, %s24, 1
        %p549 = scmp.lt.s32.totalorder %s25, 0
        %s550 = scalar_select %p549, %s25, 0
        %s551 = sadd.s32 %s550, %s548
        %s552 = smul.addr %s551, 2
        %s553 = scalar_lea.vmem %s3, %s552
      $region56: #{criterion_ohem.1} parent=51 // pred_fallthru
        _
      // Predicated region
      $region57: #{criterion_ohem.1} parent=51 // pred_check
        %p554 = pneg %p168
      $region58: #{criterion_ohem.1} parent=51 // pred_check_branch
        %556 = sbr.rel (%p554) target = $region60
      $region59: #{criterion_ohem.1} parent=51 // pred_region
        %p557 = scmp.lt.s32.totalorder %s24, 1
        %s558 = scalar_select %p557, %s24, 1
        %p559 = scmp.lt.s32.totalorder %s25, 0
        %s560 = scalar_select %p559, %s25, 0
        %s561 = sadd.s32 %s560, %s558
        %s562 = smul.addr %s561, 2
        %s563 = scalar_lea.vmem %s4, %s562
      $region60: #{criterion_ohem.1} parent=51 // pred_fallthru
        _
      // Predicated region
      $region61: #{criterion_ohem.1} parent=51 // pred_check
        %p564 = pneg %p196
      $region62: #{criterion_ohem.1} parent=51 // pred_check_branch
        %566 = sbr.rel (%p564) target = $region64
      $region63: #{criterion_ohem.1} parent=51 // pred_region
        %p567 = scmp.lt.s32.totalorder %s24, 1
        %s568 = scalar_select %p567, %s24, 1
        %p569 = scmp.lt.s32.totalorder %s25, 0
        %s570 = scalar_select %p569, %s25, 0
        %s571 = sadd.s32 %s570, %s568
        %s572 = smul.addr %s571, 2
        %s573 = scalar_lea.vmem %s5, %s572
      $region64: #{criterion_ohem.1} parent=51 // pred_fallthru
        _
      // Predicated region
      $region65: #{criterion_ohem.1} parent=51 // pred_check
        %p574 = pneg %p224
      $region66: #{criterion_ohem.1} parent=51 // pred_check_branch
        %576 = sbr.rel (%p574) target = $region68
      $region67: #{criterion_ohem.1} parent=51 // pred_region
        %p577 = scmp.lt.s32.totalorder %s24, 1
        %s578 = scalar_select %p577, %s24, 1
        %p579 = scmp.lt.s32.totalorder %s25, 0
        %s580 = scalar_select %p579, %s25, 0
        %s581 = sadd.s32 %s580, %s578
        %s582 = smul.addr %s581, 2
        %s583 = scalar_lea.vmem %s6, %s582
      $region68: #{criterion_ohem.1} parent=51 // pred_fallthru
        _
    $region52: #{criterion_ohem.1} parent=5 // pred_fallthru
      _
  $region6: #{criterion_ohem.1} parent=0 // loop_footer
    %s17 = sadd.s32 1, %s13
  $region7: #{criterion_ohem.1} parent=0 // loop_footer_branch
    %12 = sbr.rel target = $region3
  $region8: #{criterion_ohem.1} parent=0 // loop_exit
    _

</llo_original>
